<compile_context>
chip_gen: v6e
topology: v6e:2x2x1
jax: 0.10.0
libtpu: 0.0.40
codegen_flags: <defaults>
</compile_context>

<pallas_src>
import numpy as np
import jax
import jax.numpy as jnp
from jax.experimental import pallas as pl
from jax.experimental.pallas import tpu as pltpu


# ---------------------------------------------------------------------------
# Kernel
# ---------------------------------------------------------------------------
def _make_fused_kernel(level_meta, B, N):
    """One kernel for the whole pyramid. grid = (1,).

    level_meta : list of (H, W, r_off, R) -- static per-level layout info.

    Refs:
      boxes_ref : SMEM (L*B*N*4,) int32 (scalar-prefetched). Layout
                  [level, batch, box, (left, top, right, bottom)], with
                  boxes past nlabel[b] zeroed out on the host.
      att_ref   : VMEM (B, R_total, 128) attention maps, lane-dense, zero-pad.
      rows_ref  : VMEM (R_total, 128) int32 row index of each element (-1 pad).
      cols_ref  : VMEM (R_total, 128) int32 col index of each element (-1 pad).
      out_ref   : SMEM (L, 2) float32; row l = [sum|att*pt - pt|, sum(att-pt)^2].
    """
    L = len(level_meta)

    def kernel(boxes_ref, att_ref, rows_ref, cols_ref, out_ref):
        for l in range(L):
            H, W, r_off, R = level_meta[l]
            rows = rows_ref[pl.ds(r_off, R), :]      # (R, 128) int32
            cols = cols_ref[pl.ds(r_off, R), :]      # (R, 128) int32

            l1_map = jnp.zeros((R, 128), jnp.float32)
            l2_map = jnp.zeros((R, 128), jnp.float32)

            for b in range(B):
                att = att_ref[b, pl.ds(r_off, R), :].astype(jnp.float32)

                # Rasterize the GT boxes as a boolean mask (prob_target == 1).
                insides = []
                for ti in range(N):
                    base = ((l * B + b) * N + ti) * 4
                    left = boxes_ref[base + 0]
                    top = boxes_ref[base + 1]
                    right = boxes_ref[base + 2]
                    bottom = boxes_ref[base + 3]
                    insides.append((rows >= top) & (rows < bottom) &
                                   (cols >= left) & (cols < right))
                if insides:
                    mask = insides[0]
                    for m in insides[1:]:
                        mask = mask | m
                else:
                    mask = jnp.zeros((R, 128), jnp.bool_)

                # l1 = sum over masked region of |att - 1|
                l1_map = l1_map + jnp.where(mask, jnp.abs(att - 1.0), 0.0)
                # l2 = sum(att^2) + sum over masked region of (1 - 2*att)
                # (padded elements have att == 0 and mask == False).
                l2_map = l2_map + att * att + jnp.where(mask, 1.0 - 2.0 * att, 0.0)

            out_ref[l, 0] = jnp.sum(l1_map)
            out_ref[l, 1] = jnp.sum(l2_map)

    return kernel


def _fused_losses_pallas(att_concat, rows_concat, cols_concat, boxes_flat,
                         level_meta, B, N):
    """One pallas_call covering every level and batch element.

    Returns (L, 2) float32 per-level [l1_sum, l2_sum].
    """
    L = len(level_meta)
    R_total = att_concat.shape[1]

    kernel = _make_fused_kernel(level_meta, B, N)

    grid_spec = pltpu.PrefetchScalarGridSpec(
        num_scalar_prefetch=1,          # boxes_flat -> SMEM
        grid=(1,),
        in_specs=[
            pl.BlockSpec((B, R_total, 128), lambda i, boxes: (0, 0, 0)),
            pl.BlockSpec((R_total, 128), lambda i, boxes: (0, 0)),
            pl.BlockSpec((R_total, 128), lambda i, boxes: (0, 0)),
        ],
        out_specs=pl.BlockSpec(memory_space=pltpu.MemorySpace.SMEM),
    )

    # TODO(synk): on v7x the single-step grid uses one TensorCore; splitting the
    # batch axis across cores would need block-disjoint outputs and is not worth
    # it at these map sizes.
    return pl.pallas_call(
        kernel,
        out_shape=jax.ShapeDtypeStruct((L, 2), jnp.float32),
        grid_spec=grid_spec,
        compiler_params=pltpu.CompilerParams(
            dimension_semantics=("arbitrary",)),
    )(boxes_flat, att_concat, rows_concat, cols_concat)


# ---------------------------------------------------------------------------
# Host-side wrapper (mirrors AttLoss.forward, abn_losstype == 'l2')
# ---------------------------------------------------------------------------
def _lane_dense_level(att_m):
    """Flatten one (B, 1, H, W) level into a lane-dense (B, R, 128) slab plus
    row/col index constants (padding marked with -1)."""
    B, C, H, W = att_m.shape
    assert C == 1, "AttLoss assumes single-channel attention maps"
    n = H * W
    R = (((n + 127) // 128) + 7) // 8 * 8          # rows, padded to sublane mult of 8
    pad = R * 128 - n
    flat = att_m.reshape(B, n)
    flat = jnp.pad(flat, ((0, 0), (0, pad)))       # zero padding -> att^2 contributes 0
    att_lane = flat.reshape(B, R, 128)

    idx = np.arange(R * 128)
    rows = np.where(idx < n, idx // W, -1).astype(np.int32).reshape(R, 128)
    cols = np.where(idx < n, idx % W, -1).astype(np.int32).reshape(R, 128)
    return att_lane, jnp.asarray(rows), jnp.asarray(cols), H, W, R


def att_loss_forward(att_maps, seg_bb):
    """JAX/Pallas equivalent of AttLoss.forward (abn_losstype == 'l2').

    att_maps : list of (B, 1, H_i, W_i) arrays (any float dtype)
    seg_bb   : (B, N, 4) boxes in 2048x1024 pixel coords; zero rows = padding
    returns  : (loss_grid1, loss_grid2) float32 scalars
    """
    seg_bb = seg_bb.astype(jnp.float32)
    B, N, _ = seg_bb.shape

    # number of valid boxes per batch element; boxes past nlabel are zeroed so
    # the kernel can process all N boxes unconditionally (zero boxes raster
    # nothing and have zero area), matching the reference semantics exactly.
    nlabel = jnp.sum(jnp.sum(seg_bb, axis=2) > 0, axis=1).astype(jnp.int32)
    valid = (jnp.arange(N)[None, :] < nlabel[:, None])[..., None]   # (B, N, 1)

    common_dtype = att_maps[0].dtype   # pass bf16 through untouched if the model emits it

    att_parts, rows_parts, cols_parts, boxes_parts = [], [], [], []
    level_meta, level_areas, level_hw = [], [], []
    r_off = 0
    for att_m in att_maps:
        att_lane, rows, cols, H, W, R = _lane_dense_level(att_m.astype(common_dtype))
        att_parts.append(att_lane)
        rows_parts.append(rows)
        cols_parts.append(cols)
        level_meta.append((H, W, r_off, R))
        level_hw.append(float(H * W))
        r_off += R

        # Scale boxes to this level's feature-map coords and truncate (int()).
        xt = seg_bb[:, :, 0] * (W / 2048.0)
        yt = seg_bb[:, :, 1] * (H / 1024.0)
        xu = seg_bb[:, :, 2] * (W / 2048.0)
        yu = seg_bb[:, :, 3] * (H / 1024.0)
        boxes_int = jnp.stack([xt, yt, xu, yu], axis=-1).astype(jnp.int32)  # (B, N, 4)
        boxes_int = jnp.where(valid, boxes_int, 0)
        boxes_parts.append(boxes_int.reshape(-1))                           # (B*N*4,)

        areas = ((boxes_int[..., 3] - boxes_int[..., 1]) *
                 (boxes_int[..., 2] - boxes_int[..., 0]))
        level_areas.append(jnp.sum(areas).astype(jnp.float32))

    att_concat = jnp.concatenate(att_parts, axis=1)        # (B, R_total, 128)
    rows_concat = jnp.concatenate(rows_parts, axis=0)      # (R_total, 128)
    cols_concat = jnp.concatenate(cols_parts, axis=0)      # (R_total, 128)
    boxes_flat = jnp.concatenate(boxes_parts, axis=0)      # (L*B*N*4,) int32

    partial = _fused_losses_pallas(att_concat, rows_concat, cols_concat,
                                   boxes_flat, level_meta, B, N)   # (L, 2)

    # gt_area accumulates ACROSS levels (and across the whole batch of a level
    # before the division), exactly like the PyTorch loop ordering.
    gt_area_cum = 1.0 + jnp.cumsum(jnp.stack(level_areas))
    hw = jnp.asarray(level_hw, jnp.float32)

    loss_grid1 = jnp.sum(partial[:, 0] / gt_area_cum)
    loss_grid2 = jnp.sum(partial[:, 1] / hw)
    return loss_grid1, loss_grid2


# ---------------------------------------------------------------------------
# Reference + self-test
# ---------------------------------------------------------------------------
def _numpy_reference(att_maps, seg_bb):
    """Straightforward numpy port of the PyTorch forward (abn_losstype='l2')."""
    seg_bb = np.asarray(seg_bb, dtype=np.float32)
    B = att_maps[0].shape[0]
    nlabel = (seg_bb.sum(axis=2) > 0).sum(axis=1)
    gt_area = 1
    lg1 = 0.0
    lg2 = 0.0
    for att_m in att_maps:
        att_m = np.asarray(att_m, dtype=np.float32)
        H, W = att_m.shape[2], att_m.shape[3]
        pt = np.zeros((B, 1, H, W), np.float32)
        xt = seg_bb[:, :, 0] * W / 2048
        yt = seg_bb[:, :, 1] * H / 1024
        xu = seg_bb[:, :, 2] * W / 2048
        yu = seg_bb[:, :, 3] * H / 1024
        for b in range(B):
            for ti in range(int(nlabel[b])):
                l = int(xt[b, ti]); t = int(yt[b, ti])
                r = int(xu[b, ti]); bo = int(yu[b, ti])
                gt_area += (bo - t) * (r - l)
                pt[b, 0, t:bo, l:r] = 1.0
        att_gt = att_m * pt
        lg1 += float(np.abs(att_gt - pt).sum()) / gt_area
        lg2 += float(((att_m - pt) ** 2).sum()) / (H * W)
    return lg1, lg2


if __name__ == "__main__":
    key = jax.random.PRNGKey(0)
    B, N = 2, 5

    k1, k2, k3 = jax.random.split(key, 3)
    # two-level attention pyramid, single channel, NCHW
    att1 = jax.random.uniform(k1, (B, 1, 16, 16), dtype=jnp.float32)
    att2 = jax.random.uniform(k2, (B, 1, 8, 8), dtype=jnp.float32)

    # Boxes in 2048 x 1024 pixel coordinates; trailing zero rows = padding.
    kx, ky, kw, kh = jax.random.split(k3, 4)
    x0 = jax.random.randint(kx, (B, N), 0, 1024).astype(jnp.float32)
    y0 = jax.random.randint(ky, (B, N), 0, 512).astype(jnp.float32)
    bw = jax.random.randint(kw, (B, N), 128, 1024).astype(jnp.float32)
    bh = jax.random.randint(kh, (B, N), 128, 512).astype(jnp.float32)
    seg_bb = jnp.stack([x0, y0, x0 + bw, y0 + bh], axis=-1)  # (B, N, 4)
    nvalid = jnp.array([3, 2])
    keep = (jnp.arange(N)[None, :] < nvalid[:, None])[:, :, None]
    seg_bb = jnp.where(keep, seg_bb, 0.0)

    l1, l2 = att_loss_forward([att1, att2], seg_bb)
    (l1, l2) = jax.block_until_ready((l1, l2))

    ref1, ref2 = _numpy_reference([np.array(att1), np.array(att2)], np.array(seg_bb))
    assert np.allclose(float(l1), ref1, rtol=1e-5, atol=1e-4), (float(l1), ref1)
    assert np.allclose(float(l2), ref2, rtol=1e-5, atol=1e-4), (float(l2), ref2)

    print("KERNEL_OK")
</pallas_src>

<mosaic_0001>
module attributes {stable_mosaic.version = 11 : i64} {
  func.func @kernel(%arg0: i32, %arg1: memref<80xi32, #tpu.memory_space<smem>>, %arg2: memref<2x16x128xf32, #tpu.memory_space<vmem>>, %arg3: memref<16x128xi32, #tpu.memory_space<vmem>>, %arg4: memref<16x128xi32, #tpu.memory_space<vmem>>, %arg5: memref<2x2xf32, #tpu.memory_space<smem>>) attributes {dimension_semantics = [#tpu.dimension_semantics<arbitrary>], iteration_bounds = array<i64: 1>, scalar_prefetch = 1 : i64, scratch_operands = 0 : i64, tpu.core_type = #tpu.core_type<tc>, window_params = [{pipeline_mode = #tpu.pipeline_mode<synchronous>, transform_indices = @transform_0, window_bounds = array<i64: 2, 16, 128>}, {pipeline_mode = #tpu.pipeline_mode<synchronous>, transform_indices = @transform_1, window_bounds = array<i64: 16, 128>}, {pipeline_mode = #tpu.pipeline_mode<synchronous>, transform_indices = @transform_2, window_bounds = array<i64: 16, 128>}, {transform_indices = @transform_3, window_bounds = array<i64: 2, 2>}]} {
    %c0 = arith.constant 0 : index
    %c0_0 = arith.constant 0 : index
    %0 = vector.load %arg3[%c0, %c0_0] : memref<16x128xi32, #tpu.memory_space<vmem>>, vector<8x128xi32>
    %c0_1 = arith.constant 0 : index
    %c0_2 = arith.constant 0 : index
    %1 = vector.load %arg4[%c0_1, %c0_2] : memref<16x128xi32, #tpu.memory_space<vmem>>, vector<8x128xi32>
    %cst = arith.constant 0.000000e+00 : f32
    %2 = vector.broadcast %cst : f32 to vector<8x128xf32>
    %cst_3 = arith.constant 0.000000e+00 : f32
    %3 = vector.broadcast %cst_3 : f32 to vector<8x128xf32>
    %c0_4 = arith.constant 0 : index
    %c0_5 = arith.constant 0 : index
    %c0_6 = arith.constant 0 : index
    %4 = vector.load %arg2[%c0_4, %c0_5, %c0_6] : memref<2x16x128xf32, #tpu.memory_space<vmem>>, vector<1x8x128xf32>
    %5 = vector.shape_cast %4 : vector<1x8x128xf32> to vector<8x128xf32>
    %c0_7 = arith.constant 0 : index
    %6 = memref.load %arg1[%c0_7] : memref<80xi32, #tpu.memory_space<smem>>
    %c1 = arith.constant 1 : index
    %7 = memref.load %arg1[%c1] : memref<80xi32, #tpu.memory_space<smem>>
    %c2 = arith.constant 2 : index
    %8 = memref.load %arg1[%c2] : memref<80xi32, #tpu.memory_space<smem>>
    %c3 = arith.constant 3 : index
    %9 = memref.load %arg1[%c3] : memref<80xi32, #tpu.memory_space<smem>>
    %10 = vector.broadcast %7 : i32 to vector<8x128xi32>
    %11 = arith.cmpi sge, %0, %10 : vector<8x128xi32>
    %12 = vector.broadcast %9 : i32 to vector<8x128xi32>
    %13 = arith.cmpi slt, %0, %12 : vector<8x128xi32>
    %14 = arith.andi %11, %13 : vector<8x128xi1>
    %15 = vector.broadcast %6 : i32 to vector<8x128xi32>
    %16 = arith.cmpi sge, %1, %15 : vector<8x128xi32>
    %17 = arith.andi %14, %16 : vector<8x128xi1>
    %18 = vector.broadcast %8 : i32 to vector<8x128xi32>
    %19 = arith.cmpi slt, %1, %18 : vector<8x128xi32>
    %20 = arith.andi %17, %19 : vector<8x128xi1>
    %c4 = arith.constant 4 : index
    %21 = memref.load %arg1[%c4] : memref<80xi32, #tpu.memory_space<smem>>
    %c5 = arith.constant 5 : index
    %22 = memref.load %arg1[%c5] : memref<80xi32, #tpu.memory_space<smem>>
    %c6 = arith.constant 6 : index
    %23 = memref.load %arg1[%c6] : memref<80xi32, #tpu.memory_space<smem>>
    %c7 = arith.constant 7 : index
    %24 = memref.load %arg1[%c7] : memref<80xi32, #tpu.memory_space<smem>>
    %25 = vector.broadcast %22 : i32 to vector<8x128xi32>
    %26 = arith.cmpi sge, %0, %25 : vector<8x128xi32>
    %27 = vector.broadcast %24 : i32 to vector<8x128xi32>
    %28 = arith.cmpi slt, %0, %27 : vector<8x128xi32>
    %29 = arith.andi %26, %28 : vector<8x128xi1>
    %30 = vector.broadcast %21 : i32 to vector<8x128xi32>
    %31 = arith.cmpi sge, %1, %30 : vector<8x128xi32>
    %32 = arith.andi %29, %31 : vector<8x128xi1>
    %33 = vector.broadcast %23 : i32 to vector<8x128xi32>
    %34 = arith.cmpi slt, %1, %33 : vector<8x128xi32>
    %35 = arith.andi %32, %34 : vector<8x128xi1>
    %c8 = arith.constant 8 : index
    %36 = memref.load %arg1[%c8] : memref<80xi32, #tpu.memory_space<smem>>
    %c9 = arith.constant 9 : index
    %37 = memref.load %arg1[%c9] : memref<80xi32, #tpu.memory_space<smem>>
    %c10 = arith.constant 10 : index
    %38 = memref.load %arg1[%c10] : memref<80xi32, #tpu.memory_space<smem>>
    %c11 = arith.constant 11 : index
    %39 = memref.load %arg1[%c11] : memref<80xi32, #tpu.memory_space<smem>>
    %40 = vector.broadcast %37 : i32 to vector<8x128xi32>
    %41 = arith.cmpi sge, %0, %40 : vector<8x128xi32>
    %42 = vector.broadcast %39 : i32 to vector<8x128xi32>
    %43 = arith.cmpi slt, %0, %42 : vector<8x128xi32>
    %44 = arith.andi %41, %43 : vector<8x128xi1>
    %45 = vector.broadcast %36 : i32 to vector<8x128xi32>
    %46 = arith.cmpi sge, %1, %45 : vector<8x128xi32>
    %47 = arith.andi %44, %46 : vector<8x128xi1>
    %48 = vector.broadcast %38 : i32 to vector<8x128xi32>
    %49 = arith.cmpi slt, %1, %48 : vector<8x128xi32>
    %50 = arith.andi %47, %49 : vector<8x128xi1>
    %c12 = arith.constant 12 : index
    %51 = memref.load %arg1[%c12] : memref<80xi32, #tpu.memory_space<smem>>
    %c13 = arith.constant 13 : index
    %52 = memref.load %arg1[%c13] : memref<80xi32, #tpu.memory_space<smem>>
    %c14 = arith.constant 14 : index
    %53 = memref.load %arg1[%c14] : memref<80xi32, #tpu.memory_space<smem>>
    %c15 = arith.constant 15 : index
    %54 = memref.load %arg1[%c15] : memref<80xi32, #tpu.memory_space<smem>>
    %55 = vector.broadcast %52 : i32 to vector<8x128xi32>
    %56 = arith.cmpi sge, %0, %55 : vector<8x128xi32>
    %57 = vector.broadcast %54 : i32 to vector<8x128xi32>
    %58 = arith.cmpi slt, %0, %57 : vector<8x128xi32>
    %59 = arith.andi %56, %58 : vector<8x128xi1>
    %60 = vector.broadcast %51 : i32 to vector<8x128xi32>
    %61 = arith.cmpi sge, %1, %60 : vector<8x128xi32>
    %62 = arith.andi %59, %61 : vector<8x128xi1>
    %63 = vector.broadcast %53 : i32 to vector<8x128xi32>
    %64 = arith.cmpi slt, %1, %63 : vector<8x128xi32>
    %65 = arith.andi %62, %64 : vector<8x128xi1>
    %c16 = arith.constant 16 : index
    %66 = memref.load %arg1[%c16] : memref<80xi32, #tpu.memory_space<smem>>
    %c17 = arith.constant 17 : index
    %67 = memref.load %arg1[%c17] : memref<80xi32, #tpu.memory_space<smem>>
    %c18 = arith.constant 18 : index
    %68 = memref.load %arg1[%c18] : memref<80xi32, #tpu.memory_space<smem>>
    %c19 = arith.constant 19 : index
    %69 = memref.load %arg1[%c19] : memref<80xi32, #tpu.memory_space<smem>>
    %70 = vector.broadcast %67 : i32 to vector<8x128xi32>
    %71 = arith.cmpi sge, %0, %70 : vector<8x128xi32>
    %72 = vector.broadcast %69 : i32 to vector<8x128xi32>
    %73 = arith.cmpi slt, %0, %72 : vector<8x128xi32>
    %74 = arith.andi %71, %73 : vector<8x128xi1>
    %75 = vector.broadcast %66 : i32 to vector<8x128xi32>
    %76 = arith.cmpi sge, %1, %75 : vector<8x128xi32>
    %77 = arith.andi %74, %76 : vector<8x128xi1>
    %78 = vector.broadcast %68 : i32 to vector<8x128xi32>
    %79 = arith.cmpi slt, %1, %78 : vector<8x128xi32>
    %80 = arith.andi %77, %79 : vector<8x128xi1>
    %81 = arith.ori %20, %35 : vector<8x128xi1>
    %82 = arith.ori %81, %50 : vector<8x128xi1>
    %83 = arith.ori %82, %65 : vector<8x128xi1>
    %84 = arith.ori %83, %80 : vector<8x128xi1>
    %cst_8 = arith.constant 1.000000e+00 : f32
    %85 = vector.broadcast %cst_8 : f32 to vector<8x128xf32>
    %86 = arith.subf %5, %85 : vector<8x128xf32>
    %87 = math.absf %86 : vector<8x128xf32>
    %cst_9 = arith.constant 0.000000e+00 : f32
    %88 = vector.broadcast %cst_9 : f32 to vector<8x128xf32>
    %89 = arith.select %84, %87, %88 : vector<8x128xi1>, vector<8x128xf32>
    %90 = arith.addf %2, %89 : vector<8x128xf32>
    %91 = arith.mulf %5, %5 : vector<8x128xf32>
    %92 = arith.addf %3, %91 : vector<8x128xf32>
    %cst_10 = arith.constant 2.000000e+00 : f32
    %93 = vector.broadcast %cst_10 : f32 to vector<8x128xf32>
    %94 = arith.mulf %93, %5 : vector<8x128xf32>
    %cst_11 = arith.constant 1.000000e+00 : f32
    %95 = vector.broadcast %cst_11 : f32 to vector<8x128xf32>
    %96 = arith.subf %95, %94 : vector<8x128xf32>
    %cst_12 = arith.constant 0.000000e+00 : f32
    %97 = vector.broadcast %cst_12 : f32 to vector<8x128xf32>
    %98 = arith.select %84, %96, %97 : vector<8x128xi1>, vector<8x128xf32>
    %99 = arith.addf %92, %98 : vector<8x128xf32>
    %c1_13 = arith.constant 1 : index
    %c0_14 = arith.constant 0 : index
    %c0_15 = arith.constant 0 : index
    %100 = vector.load %arg2[%c1_13, %c0_14, %c0_15] : memref<2x16x128xf32, #tpu.memory_space<vmem>>, vector<1x8x128xf32>
    %101 = vector.shape_cast %100 : vector<1x8x128xf32> to vector<8x128xf32>
    %c20 = arith.constant 20 : index
    %102 = memref.load %arg1[%c20] : memref<80xi32, #tpu.memory_space<smem>>
    %c21 = arith.constant 21 : index
    %103 = memref.load %arg1[%c21] : memref<80xi32, #tpu.memory_space<smem>>
    %c22 = arith.constant 22 : index
    %104 = memref.load %arg1[%c22] : memref<80xi32, #tpu.memory_space<smem>>
    %c23 = arith.constant 23 : index
    %105 = memref.load %arg1[%c23] : memref<80xi32, #tpu.memory_space<smem>>
    %106 = vector.broadcast %103 : i32 to vector<8x128xi32>
    %107 = arith.cmpi sge, %0, %106 : vector<8x128xi32>
    %108 = vector.broadcast %105 : i32 to vector<8x128xi32>
    %109 = arith.cmpi slt, %0, %108 : vector<8x128xi32>
    %110 = arith.andi %107, %109 : vector<8x128xi1>
    %111 = vector.broadcast %102 : i32 to vector<8x128xi32>
    %112 = arith.cmpi sge, %1, %111 : vector<8x128xi32>
    %113 = arith.andi %110, %112 : vector<8x128xi1>
    %114 = vector.broadcast %104 : i32 to vector<8x128xi32>
    %115 = arith.cmpi slt, %1, %114 : vector<8x128xi32>
    %116 = arith.andi %113, %115 : vector<8x128xi1>
    %c24 = arith.constant 24 : index
    %117 = memref.load %arg1[%c24] : memref<80xi32, #tpu.memory_space<smem>>
    %c25 = arith.constant 25 : index
    %118 = memref.load %arg1[%c25] : memref<80xi32, #tpu.memory_space<smem>>
    %c26 = arith.constant 26 : index
    %119 = memref.load %arg1[%c26] : memref<80xi32, #tpu.memory_space<smem>>
    %c27 = arith.constant 27 : index
    %120 = memref.load %arg1[%c27] : memref<80xi32, #tpu.memory_space<smem>>
    %121 = vector.broadcast %118 : i32 to vector<8x128xi32>
    %122 = arith.cmpi sge, %0, %121 : vector<8x128xi32>
    %123 = vector.broadcast %120 : i32 to vector<8x128xi32>
    %124 = arith.cmpi slt, %0, %123 : vector<8x128xi32>
    %125 = arith.andi %122, %124 : vector<8x128xi1>
    %126 = vector.broadcast %117 : i32 to vector<8x128xi32>
    %127 = arith.cmpi sge, %1, %126 : vector<8x128xi32>
    %128 = arith.andi %125, %127 : vector<8x128xi1>
    %129 = vector.broadcast %119 : i32 to vector<8x128xi32>
    %130 = arith.cmpi slt, %1, %129 : vector<8x128xi32>
    %131 = arith.andi %128, %130 : vector<8x128xi1>
    %c28 = arith.constant 28 : index
    %132 = memref.load %arg1[%c28] : memref<80xi32, #tpu.memory_space<smem>>
    %c29 = arith.constant 29 : index
    %133 = memref.load %arg1[%c29] : memref<80xi32, #tpu.memory_space<smem>>
    %c30 = arith.constant 30 : index
    %134 = memref.load %arg1[%c30] : memref<80xi32, #tpu.memory_space<smem>>
    %c31 = arith.constant 31 : index
    %135 = memref.load %arg1[%c31] : memref<80xi32, #tpu.memory_space<smem>>
    %136 = vector.broadcast %133 : i32 to vector<8x128xi32>
    %137 = arith.cmpi sge, %0, %136 : vector<8x128xi32>
    %138 = vector.broadcast %135 : i32 to vector<8x128xi32>
    %139 = arith.cmpi slt, %0, %138 : vector<8x128xi32>
    %140 = arith.andi %137, %139 : vector<8x128xi1>
    %141 = vector.broadcast %132 : i32 to vector<8x128xi32>
    %142 = arith.cmpi sge, %1, %141 : vector<8x128xi32>
    %143 = arith.andi %140, %142 : vector<8x128xi1>
    %144 = vector.broadcast %134 : i32 to vector<8x128xi32>
    %145 = arith.cmpi slt, %1, %144 : vector<8x128xi32>
    %146 = arith.andi %143, %145 : vector<8x128xi1>
    %c32 = arith.constant 32 : index
    %147 = memref.load %arg1[%c32] : memref<80xi32, #tpu.memory_space<smem>>
    %c33 = arith.constant 33 : index
    %148 = memref.load %arg1[%c33] : memref<80xi32, #tpu.memory_space<smem>>
    %c34 = arith.constant 34 : index
    %149 = memref.load %arg1[%c34] : memref<80xi32, #tpu.memory_space<smem>>
    %c35 = arith.constant 35 : index
    %150 = memref.load %arg1[%c35] : memref<80xi32, #tpu.memory_space<smem>>
    %151 = vector.broadcast %148 : i32 to vector<8x128xi32>
    %152 = arith.cmpi sge, %0, %151 : vector<8x128xi32>
    %153 = vector.broadcast %150 : i32 to vector<8x128xi32>
    %154 = arith.cmpi slt, %0, %153 : vector<8x128xi32>
    %155 = arith.andi %152, %154 : vector<8x128xi1>
    %156 = vector.broadcast %147 : i32 to vector<8x128xi32>
    %157 = arith.cmpi sge, %1, %156 : vector<8x128xi32>
    %158 = arith.andi %155, %157 : vector<8x128xi1>
    %159 = vector.broadcast %149 : i32 to vector<8x128xi32>
    %160 = arith.cmpi slt, %1, %159 : vector<8x128xi32>
    %161 = arith.andi %158, %160 : vector<8x128xi1>
    %c36 = arith.constant 36 : index
    %162 = memref.load %arg1[%c36] : memref<80xi32, #tpu.memory_space<smem>>
    %c37 = arith.constant 37 : index
    %163 = memref.load %arg1[%c37] : memref<80xi32, #tpu.memory_space<smem>>
    %c38 = arith.constant 38 : index
    %164 = memref.load %arg1[%c38] : memref<80xi32, #tpu.memory_space<smem>>
    %c39 = arith.constant 39 : index
    %165 = memref.load %arg1[%c39] : memref<80xi32, #tpu.memory_space<smem>>
    %166 = vector.broadcast %163 : i32 to vector<8x128xi32>
    %167 = arith.cmpi sge, %0, %166 : vector<8x128xi32>
    %168 = vector.broadcast %165 : i32 to vector<8x128xi32>
    %169 = arith.cmpi slt, %0, %168 : vector<8x128xi32>
    %170 = arith.andi %167, %169 : vector<8x128xi1>
    %171 = vector.broadcast %162 : i32 to vector<8x128xi32>
    %172 = arith.cmpi sge, %1, %171 : vector<8x128xi32>
    %173 = arith.andi %170, %172 : vector<8x128xi1>
    %174 = vector.broadcast %164 : i32 to vector<8x128xi32>
    %175 = arith.cmpi slt, %1, %174 : vector<8x128xi32>
    %176 = arith.andi %173, %175 : vector<8x128xi1>
    %177 = arith.ori %116, %131 : vector<8x128xi1>
    %178 = arith.ori %177, %146 : vector<8x128xi1>
    %179 = arith.ori %178, %161 : vector<8x128xi1>
    %180 = arith.ori %179, %176 : vector<8x128xi1>
    %cst_16 = arith.constant 1.000000e+00 : f32
    %181 = vector.broadcast %cst_16 : f32 to vector<8x128xf32>
    %182 = arith.subf %101, %181 : vector<8x128xf32>
    %183 = math.absf %182 : vector<8x128xf32>
    %cst_17 = arith.constant 0.000000e+00 : f32
    %184 = vector.broadcast %cst_17 : f32 to vector<8x128xf32>
    %185 = arith.select %180, %183, %184 : vector<8x128xi1>, vector<8x128xf32>
    %186 = arith.addf %90, %185 : vector<8x128xf32>
    %187 = arith.mulf %101, %101 : vector<8x128xf32>
    %188 = arith.addf %99, %187 : vector<8x128xf32>
    %cst_18 = arith.constant 2.000000e+00 : f32
    %189 = vector.broadcast %cst_18 : f32 to vector<8x128xf32>
    %190 = arith.mulf %189, %101 : vector<8x128xf32>
    %cst_19 = arith.constant 1.000000e+00 : f32
    %191 = vector.broadcast %cst_19 : f32 to vector<8x128xf32>
    %192 = arith.subf %191, %190 : vector<8x128xf32>
    %cst_20 = arith.constant 0.000000e+00 : f32
    %193 = vector.broadcast %cst_20 : f32 to vector<8x128xf32>
    %194 = arith.select %180, %192, %193 : vector<8x128xi1>, vector<8x128xf32>
    %195 = arith.addf %188, %194 : vector<8x128xf32>
    %196 = vector.shape_cast %186 : vector<8x128xf32> to vector<1x8x128xf32>
    %cst_21 = arith.constant dense<0.000000e+00> : vector<1xf32>
    %197 = vector.multi_reduction <add>, %196, %cst_21 [1, 2] : vector<1x8x128xf32> to vector<1xf32>
    %198 = vector.shape_cast %197 : vector<1xf32> to vector<1x1x1xf32>
    %199 = vector.extract %198[0, 0, 0] : f32 from vector<1x1x1xf32>
    %c0_22 = arith.constant 0 : index
    %c0_23 = arith.constant 0 : index
    %200 = memref.load %arg5[%c0_22, %c0_23] : memref<2x2xf32, #tpu.memory_space<smem>>
    memref.store %199, %arg5[%c0_22, %c0_23] : memref<2x2xf32, #tpu.memory_space<smem>>
    %201 = vector.shape_cast %195 : vector<8x128xf32> to vector<1x8x128xf32>
    %cst_24 = arith.constant dense<0.000000e+00> : vector<1xf32>
    %202 = vector.multi_reduction <add>, %201, %cst_24 [1, 2] : vector<1x8x128xf32> to vector<1xf32>
    %203 = vector.shape_cast %202 : vector<1xf32> to vector<1x1x1xf32>
    %204 = vector.extract %203[0, 0, 0] : f32 from vector<1x1x1xf32>
    %c0_25 = arith.constant 0 : index
    %c1_26 = arith.constant 1 : index
    %205 = memref.load %arg5[%c0_25, %c1_26] : memref<2x2xf32, #tpu.memory_space<smem>>
    memref.store %204, %arg5[%c0_25, %c1_26] : memref<2x2xf32, #tpu.memory_space<smem>>
    %c8_27 = arith.constant 8 : index
    %c0_28 = arith.constant 0 : index
    %206 = vector.load %arg3[%c8_27, %c0_28] : memref<16x128xi32, #tpu.memory_space<vmem>>, vector<8x128xi32>
    %c8_29 = arith.constant 8 : index
    %c0_30 = arith.constant 0 : index
    %207 = vector.load %arg4[%c8_29, %c0_30] : memref<16x128xi32, #tpu.memory_space<vmem>>, vector<8x128xi32>
    %cst_31 = arith.constant 0.000000e+00 : f32
    %208 = vector.broadcast %cst_31 : f32 to vector<8x128xf32>
    %cst_32 = arith.constant 0.000000e+00 : f32
    %209 = vector.broadcast %cst_32 : f32 to vector<8x128xf32>
    %c0_33 = arith.constant 0 : index
    %c8_34 = arith.constant 8 : index
    %c0_35 = arith.constant 0 : index
    %210 = vector.load %arg2[%c0_33, %c8_34, %c0_35] : memref<2x16x128xf32, #tpu.memory_space<vmem>>, vector<1x8x128xf32>
    %211 = vector.shape_cast %210 : vector<1x8x128xf32> to vector<8x128xf32>
    %c40 = arith.constant 40 : index
    %212 = memref.load %arg1[%c40] : memref<80xi32, #tpu.memory_space<smem>>
    %c41 = arith.constant 41 : index
    %213 = memref.load %arg1[%c41] : memref<80xi32, #tpu.memory_space<smem>>
    %c42 = arith.constant 42 : index
    %214 = memref.load %arg1[%c42] : memref<80xi32, #tpu.memory_space<smem>>
    %c43 = arith.constant 43 : index
    %215 = memref.load %arg1[%c43] : memref<80xi32, #tpu.memory_space<smem>>
    %216 = vector.broadcast %213 : i32 to vector<8x128xi32>
    %217 = arith.cmpi sge, %206, %216 : vector<8x128xi32>
    %218 = vector.broadcast %215 : i32 to vector<8x128xi32>
    %219 = arith.cmpi slt, %206, %218 : vector<8x128xi32>
    %220 = arith.andi %217, %219 : vector<8x128xi1>
    %221 = vector.broadcast %212 : i32 to vector<8x128xi32>
    %222 = arith.cmpi sge, %207, %221 : vector<8x128xi32>
    %223 = arith.andi %220, %222 : vector<8x128xi1>
    %224 = vector.broadcast %214 : i32 to vector<8x128xi32>
    %225 = arith.cmpi slt, %207, %224 : vector<8x128xi32>
    %226 = arith.andi %223, %225 : vector<8x128xi1>
    %c44 = arith.constant 44 : index
    %227 = memref.load %arg1[%c44] : memref<80xi32, #tpu.memory_space<smem>>
    %c45 = arith.constant 45 : index
    %228 = memref.load %arg1[%c45] : memref<80xi32, #tpu.memory_space<smem>>
    %c46 = arith.constant 46 : index
    %229 = memref.load %arg1[%c46] : memref<80xi32, #tpu.memory_space<smem>>
    %c47 = arith.constant 47 : index
    %230 = memref.load %arg1[%c47] : memref<80xi32, #tpu.memory_space<smem>>
    %231 = vector.broadcast %228 : i32 to vector<8x128xi32>
    %232 = arith.cmpi sge, %206, %231 : vector<8x128xi32>
    %233 = vector.broadcast %230 : i32 to vector<8x128xi32>
    %234 = arith.cmpi slt, %206, %233 : vector<8x128xi32>
    %235 = arith.andi %232, %234 : vector<8x128xi1>
    %236 = vector.broadcast %227 : i32 to vector<8x128xi32>
    %237 = arith.cmpi sge, %207, %236 : vector<8x128xi32>
    %238 = arith.andi %235, %237 : vector<8x128xi1>
    %239 = vector.broadcast %229 : i32 to vector<8x128xi32>
    %240 = arith.cmpi slt, %207, %239 : vector<8x128xi32>
    %241 = arith.andi %238, %240 : vector<8x128xi1>
    %c48 = arith.constant 48 : index
    %242 = memref.load %arg1[%c48] : memref<80xi32, #tpu.memory_space<smem>>
    %c49 = arith.constant 49 : index
    %243 = memref.load %arg1[%c49] : memref<80xi32, #tpu.memory_space<smem>>
    %c50 = arith.constant 50 : index
    %244 = memref.load %arg1[%c50] : memref<80xi32, #tpu.memory_space<smem>>
    %c51 = arith.constant 51 : index
    %245 = memref.load %arg1[%c51] : memref<80xi32, #tpu.memory_space<smem>>
    %246 = vector.broadcast %243 : i32 to vector<8x128xi32>
    %247 = arith.cmpi sge, %206, %246 : vector<8x128xi32>
    %248 = vector.broadcast %245 : i32 to vector<8x128xi32>
    %249 = arith.cmpi slt, %206, %248 : vector<8x128xi32>
    %250 = arith.andi %247, %249 : vector<8x128xi1>
    %251 = vector.broadcast %242 : i32 to vector<8x128xi32>
    %252 = arith.cmpi sge, %207, %251 : vector<8x128xi32>
    %253 = arith.andi %250, %252 : vector<8x128xi1>
    %254 = vector.broadcast %244 : i32 to vector<8x128xi32>
    %255 = arith.cmpi slt, %207, %254 : vector<8x128xi32>
    %256 = arith.andi %253, %255 : vector<8x128xi1>
    %c52 = arith.constant 52 : index
    %257 = memref.load %arg1[%c52] : memref<80xi32, #tpu.memory_space<smem>>
    %c53 = arith.constant 53 : index
    %258 = memref.load %arg1[%c53] : memref<80xi32, #tpu.memory_space<smem>>
    %c54 = arith.constant 54 : index
    %259 = memref.load %arg1[%c54] : memref<80xi32, #tpu.memory_space<smem>>
    %c55 = arith.constant 55 : index
    %260 = memref.load %arg1[%c55] : memref<80xi32, #tpu.memory_space<smem>>
    %261 = vector.broadcast %258 : i32 to vector<8x128xi32>
    %262 = arith.cmpi sge, %206, %261 : vector<8x128xi32>
    %263 = vector.broadcast %260 : i32 to vector<8x128xi32>
    %264 = arith.cmpi slt, %206, %263 : vector<8x128xi32>
    %265 = arith.andi %262, %264 : vector<8x128xi1>
    %266 = vector.broadcast %257 : i32 to vector<8x128xi32>
    %267 = arith.cmpi sge, %207, %266 : vector<8x128xi32>
    %268 = arith.andi %265, %267 : vector<8x128xi1>
    %269 = vector.broadcast %259 : i32 to vector<8x128xi32>
    %270 = arith.cmpi slt, %207, %269 : vector<8x128xi32>
    %271 = arith.andi %268, %270 : vector<8x128xi1>
    %c56 = arith.constant 56 : index
    %272 = memref.load %arg1[%c56] : memref<80xi32, #tpu.memory_space<smem>>
    %c57 = arith.constant 57 : index
    %273 = memref.load %arg1[%c57] : memref<80xi32, #tpu.memory_space<smem>>
    %c58 = arith.constant 58 : index
    %274 = memref.load %arg1[%c58] : memref<80xi32, #tpu.memory_space<smem>>
    %c59 = arith.constant 59 : index
    %275 = memref.load %arg1[%c59] : memref<80xi32, #tpu.memory_space<smem>>
    %276 = vector.broadcast %273 : i32 to vector<8x128xi32>
    %277 = arith.cmpi sge, %206, %276 : vector<8x128xi32>
    %278 = vector.broadcast %275 : i32 to vector<8x128xi32>
    %279 = arith.cmpi slt, %206, %278 : vector<8x128xi32>
    %280 = arith.andi %277, %279 : vector<8x128xi1>
    %281 = vector.broadcast %272 : i32 to vector<8x128xi32>
    %282 = arith.cmpi sge, %207, %281 : vector<8x128xi32>
    %283 = arith.andi %280, %282 : vector<8x128xi1>
    %284 = vector.broadcast %274 : i32 to vector<8x128xi32>
    %285 = arith.cmpi slt, %207, %284 : vector<8x128xi32>
    %286 = arith.andi %283, %285 : vector<8x128xi1>
    %287 = arith.ori %226, %241 : vector<8x128xi1>
    %288 = arith.ori %287, %256 : vector<8x128xi1>
    %289 = arith.ori %288, %271 : vector<8x128xi1>
    %290 = arith.ori %289, %286 : vector<8x128xi1>
    %cst_36 = arith.constant 1.000000e+00 : f32
    %291 = vector.broadcast %cst_36 : f32 to vector<8x128xf32>
    %292 = arith.subf %211, %291 : vector<8x128xf32>
    %293 = math.absf %292 : vector<8x128xf32>
    %cst_37 = arith.constant 0.000000e+00 : f32
    %294 = vector.broadcast %cst_37 : f32 to vector<8x128xf32>
    %295 = arith.select %290, %293, %294 : vector<8x128xi1>, vector<8x128xf32>
    %296 = arith.addf %208, %295 : vector<8x128xf32>
    %297 = arith.mulf %211, %211 : vector<8x128xf32>
    %298 = arith.addf %209, %297 : vector<8x128xf32>
    %cst_38 = arith.constant 2.000000e+00 : f32
    %299 = vector.broadcast %cst_38 : f32 to vector<8x128xf32>
    %300 = arith.mulf %299, %211 : vector<8x128xf32>
    %cst_39 = arith.constant 1.000000e+00 : f32
    %301 = vector.broadcast %cst_39 : f32 to vector<8x128xf32>
    %302 = arith.subf %301, %300 : vector<8x128xf32>
    %cst_40 = arith.constant 0.000000e+00 : f32
    %303 = vector.broadcast %cst_40 : f32 to vector<8x128xf32>
    %304 = arith.select %290, %302, %303 : vector<8x128xi1>, vector<8x128xf32>
    %305 = arith.addf %298, %304 : vector<8x128xf32>
    %c1_41 = arith.constant 1 : index
    %c8_42 = arith.constant 8 : index
    %c0_43 = arith.constant 0 : index
    %306 = vector.load %arg2[%c1_41, %c8_42, %c0_43] : memref<2x16x128xf32, #tpu.memory_space<vmem>>, vector<1x8x128xf32>
    %307 = vector.shape_cast %306 : vector<1x8x128xf32> to vector<8x128xf32>
    %c60 = arith.constant 60 : index
    %308 = memref.load %arg1[%c60] : memref<80xi32, #tpu.memory_space<smem>>
    %c61 = arith.constant 61 : index
    %309 = memref.load %arg1[%c61] : memref<80xi32, #tpu.memory_space<smem>>
    %c62 = arith.constant 62 : index
    %310 = memref.load %arg1[%c62] : memref<80xi32, #tpu.memory_space<smem>>
    %c63 = arith.constant 63 : index
    %311 = memref.load %arg1[%c63] : memref<80xi32, #tpu.memory_space<smem>>
    %312 = vector.broadcast %309 : i32 to vector<8x128xi32>
    %313 = arith.cmpi sge, %206, %312 : vector<8x128xi32>
    %314 = vector.broadcast %311 : i32 to vector<8x128xi32>
    %315 = arith.cmpi slt, %206, %314 : vector<8x128xi32>
    %316 = arith.andi %313, %315 : vector<8x128xi1>
    %317 = vector.broadcast %308 : i32 to vector<8x128xi32>
    %318 = arith.cmpi sge, %207, %317 : vector<8x128xi32>
    %319 = arith.andi %316, %318 : vector<8x128xi1>
    %320 = vector.broadcast %310 : i32 to vector<8x128xi32>
    %321 = arith.cmpi slt, %207, %320 : vector<8x128xi32>
    %322 = arith.andi %319, %321 : vector<8x128xi1>
    %c64 = arith.constant 64 : index
    %323 = memref.load %arg1[%c64] : memref<80xi32, #tpu.memory_space<smem>>
    %c65 = arith.constant 65 : index
    %324 = memref.load %arg1[%c65] : memref<80xi32, #tpu.memory_space<smem>>
    %c66 = arith.constant 66 : index
    %325 = memref.load %arg1[%c66] : memref<80xi32, #tpu.memory_space<smem>>
    %c67 = arith.constant 67 : index
    %326 = memref.load %arg1[%c67] : memref<80xi32, #tpu.memory_space<smem>>
    %327 = vector.broadcast %324 : i32 to vector<8x128xi32>
    %328 = arith.cmpi sge, %206, %327 : vector<8x128xi32>
    %329 = vector.broadcast %326 : i32 to vector<8x128xi32>
    %330 = arith.cmpi slt, %206, %329 : vector<8x128xi32>
    %331 = arith.andi %328, %330 : vector<8x128xi1>
    %332 = vector.broadcast %323 : i32 to vector<8x128xi32>
    %333 = arith.cmpi sge, %207, %332 : vector<8x128xi32>
    %334 = arith.andi %331, %333 : vector<8x128xi1>
    %335 = vector.broadcast %325 : i32 to vector<8x128xi32>
    %336 = arith.cmpi slt, %207, %335 : vector<8x128xi32>
    %337 = arith.andi %334, %336 : vector<8x128xi1>
    %c68 = arith.constant 68 : index
    %338 = memref.load %arg1[%c68] : memref<80xi32, #tpu.memory_space<smem>>
    %c69 = arith.constant 69 : index
    %339 = memref.load %arg1[%c69] : memref<80xi32, #tpu.memory_space<smem>>
    %c70 = arith.constant 70 : index
    %340 = memref.load %arg1[%c70] : memref<80xi32, #tpu.memory_space<smem>>
    %c71 = arith.constant 71 : index
    %341 = memref.load %arg1[%c71] : memref<80xi32, #tpu.memory_space<smem>>
    %342 = vector.broadcast %339 : i32 to vector<8x128xi32>
    %343 = arith.cmpi sge, %206, %342 : vector<8x128xi32>
    %344 = vector.broadcast %341 : i32 to vector<8x128xi32>
    %345 = arith.cmpi slt, %206, %344 : vector<8x128xi32>
    %346 = arith.andi %343, %345 : vector<8x128xi1>
    %347 = vector.broadcast %338 : i32 to vector<8x128xi32>
    %348 = arith.cmpi sge, %207, %347 : vector<8x128xi32>
    %349 = arith.andi %346, %348 : vector<8x128xi1>
    %350 = vector.broadcast %340 : i32 to vector<8x128xi32>
    %351 = arith.cmpi slt, %207, %350 : vector<8x128xi32>
    %352 = arith.andi %349, %351 : vector<8x128xi1>
    %c72 = arith.constant 72 : index
    %353 = memref.load %arg1[%c72] : memref<80xi32, #tpu.memory_space<smem>>
    %c73 = arith.constant 73 : index
    %354 = memref.load %arg1[%c73] : memref<80xi32, #tpu.memory_space<smem>>
    %c74 = arith.constant 74 : index
    %355 = memref.load %arg1[%c74] : memref<80xi32, #tpu.memory_space<smem>>
    %c75 = arith.constant 75 : index
    %356 = memref.load %arg1[%c75] : memref<80xi32, #tpu.memory_space<smem>>
    %357 = vector.broadcast %354 : i32 to vector<8x128xi32>
    %358 = arith.cmpi sge, %206, %357 : vector<8x128xi32>
    %359 = vector.broadcast %356 : i32 to vector<8x128xi32>
    %360 = arith.cmpi slt, %206, %359 : vector<8x128xi32>
    %361 = arith.andi %358, %360 : vector<8x128xi1>
    %362 = vector.broadcast %353 : i32 to vector<8x128xi32>
    %363 = arith.cmpi sge, %207, %362 : vector<8x128xi32>
    %364 = arith.andi %361, %363 : vector<8x128xi1>
    %365 = vector.broadcast %355 : i32 to vector<8x128xi32>
    %366 = arith.cmpi slt, %207, %365 : vector<8x128xi32>
    %367 = arith.andi %364, %366 : vector<8x128xi1>
    %c76 = arith.constant 76 : index
    %368 = memref.load %arg1[%c76] : memref<80xi32, #tpu.memory_space<smem>>
    %c77 = arith.constant 77 : index
    %369 = memref.load %arg1[%c77] : memref<80xi32, #tpu.memory_space<smem>>
    %c78 = arith.constant 78 : index
    %370 = memref.load %arg1[%c78] : memref<80xi32, #tpu.memory_space<smem>>
    %c79 = arith.constant 79 : index
    %371 = memref.load %arg1[%c79] : memref<80xi32, #tpu.memory_space<smem>>
    %372 = vector.broadcast %369 : i32 to vector<8x128xi32>
    %373 = arith.cmpi sge, %206, %372 : vector<8x128xi32>
    %374 = vector.broadcast %371 : i32 to vector<8x128xi32>
    %375 = arith.cmpi slt, %206, %374 : vector<8x128xi32>
    %376 = arith.andi %373, %375 : vector<8x128xi1>
    %377 = vector.broadcast %368 : i32 to vector<8x128xi32>
    %378 = arith.cmpi sge, %207, %377 : vector<8x128xi32>
    %379 = arith.andi %376, %378 : vector<8x128xi1>
    %380 = vector.broadcast %370 : i32 to vector<8x128xi32>
    %381 = arith.cmpi slt, %207, %380 : vector<8x128xi32>
    %382 = arith.andi %379, %381 : vector<8x128xi1>
    %383 = arith.ori %322, %337 : vector<8x128xi1>
    %384 = arith.ori %383, %352 : vector<8x128xi1>
    %385 = arith.ori %384, %367 : vector<8x128xi1>
    %386 = arith.ori %385, %382 : vector<8x128xi1>
    %cst_44 = arith.constant 1.000000e+00 : f32
    %387 = vector.broadcast %cst_44 : f32 to vector<8x128xf32>
    %388 = arith.subf %307, %387 : vector<8x128xf32>
    %389 = math.absf %388 : vector<8x128xf32>
    %cst_45 = arith.constant 0.000000e+00 : f32
    %390 = vector.broadcast %cst_45 : f32 to vector<8x128xf32>
    %391 = arith.select %386, %389, %390 : vector<8x128xi1>, vector<8x128xf32>
    %392 = arith.addf %296, %391 : vector<8x128xf32>
    %393 = arith.mulf %307, %307 : vector<8x128xf32>
    %394 = arith.addf %305, %393 : vector<8x128xf32>
    %cst_46 = arith.constant 2.000000e+00 : f32
    %395 = vector.broadcast %cst_46 : f32 to vector<8x128xf32>
    %396 = arith.mulf %395, %307 : vector<8x128xf32>
    %cst_47 = arith.constant 1.000000e+00 : f32
    %397 = vector.broadcast %cst_47 : f32 to vector<8x128xf32>
    %398 = arith.subf %397, %396 : vector<8x128xf32>
    %cst_48 = arith.constant 0.000000e+00 : f32
    %399 = vector.broadcast %cst_48 : f32 to vector<8x128xf32>
    %400 = arith.select %386, %398, %399 : vector<8x128xi1>, vector<8x128xf32>
    %401 = arith.addf %394, %400 : vector<8x128xf32>
    %402 = vector.shape_cast %392 : vector<8x128xf32> to vector<1x8x128xf32>
    %cst_49 = arith.constant dense<0.000000e+00> : vector<1xf32>
    %403 = vector.multi_reduction <add>, %402, %cst_49 [1, 2] : vector<1x8x128xf32> to vector<1xf32>
    %404 = vector.shape_cast %403 : vector<1xf32> to vector<1x1x1xf32>
    %405 = vector.extract %404[0, 0, 0] : f32 from vector<1x1x1xf32>
    %c1_50 = arith.constant 1 : index
    %c0_51 = arith.constant 0 : index
    %406 = memref.load %arg5[%c1_50, %c0_51] : memref<2x2xf32, #tpu.memory_space<smem>>
    memref.store %405, %arg5[%c1_50, %c0_51] : memref<2x2xf32, #tpu.memory_space<smem>>
    %407 = vector.shape_cast %401 : vector<8x128xf32> to vector<1x8x128xf32>
    %cst_52 = arith.constant dense<0.000000e+00> : vector<1xf32>
    %408 = vector.multi_reduction <add>, %407, %cst_52 [1, 2] : vector<1x8x128xf32> to vector<1xf32>
    %409 = vector.shape_cast %408 : vector<1xf32> to vector<1x1x1xf32>
    %410 = vector.extract %409[0, 0, 0] : f32 from vector<1x1x1xf32>
    %c1_53 = arith.constant 1 : index
    %c1_54 = arith.constant 1 : index
    %411 = memref.load %arg5[%c1_53, %c1_54] : memref<2x2xf32, #tpu.memory_space<smem>>
    memref.store %410, %arg5[%c1_53, %c1_54] : memref<2x2xf32, #tpu.memory_space<smem>>
    return
  }
  func.func @transform_0(%arg0: i32, %arg1: memref<80xi32, #tpu.memory_space<smem>>) -> (i32, i32, i32) {
    %c0_i32 = arith.constant 0 : i32
    %c0_i32_0 = arith.constant 0 : i32
    %c0_i32_1 = arith.constant 0 : i32
    %c0_i32_2 = arith.constant 0 : i32
    return %c0_i32, %c0_i32_0, %c0_i32_1 : i32, i32, i32
  }
  func.func @transform_1(%arg0: i32, %arg1: memref<80xi32, #tpu.memory_space<smem>>) -> (i32, i32) {
    %c0_i32 = arith.constant 0 : i32
    %c0_i32_0 = arith.constant 0 : i32
    %c0_i32_1 = arith.constant 0 : i32
    return %c0_i32, %c0_i32_0 : i32, i32
  }
  func.func @transform_2(%arg0: i32, %arg1: memref<80xi32, #tpu.memory_space<smem>>) -> (i32, i32) {
    %c0_i32 = arith.constant 0 : i32
    %c0_i32_0 = arith.constant 0 : i32
    %c0_i32_1 = arith.constant 0 : i32
    return %c0_i32, %c0_i32_0 : i32, i32
  }
  func.func @transform_3(%arg0: i32, %arg1: memref<80xi32, #tpu.memory_space<smem>>) -> (i32, i32) {
    %c0_i32 = arith.constant 0 : i32
    %c0_i32_0 = arith.constant 0 : i32
    %c0_i32_1 = arith.constant 0 : i32
    return %c0_i32, %c0_i32_0 : i32, i32
  }
}

</mosaic_0001>

<llo_original>
// kernel: tpu_custom_call.1
$region0: #{tpu_custom_call.1}
  #allocation0 [shape = 'u32[]', space=smem, size = 0x4, offset = 0x4, fixed_abs, tag = 'smem constant byte address 0x4 - core index']
  #allocation1 [shape = 'u32[144,128]{1,0:T(1,128)}', space=vmem, size = 0x12000, scoped, tag = 'internal scratch']
  #allocation2 [shape = 's32[1]{0}', space=sflag, size = 0x4, scoped, tag = 'scoped memory for tpu_custom_call.1']
  #allocation3 [shape = 'u8[512]{0}', space=smem, size = 0x200, scoped, tag = 'prefetched SMEM operand 0']
  %s0 = inlined_call_operand.hbm [shape: s32[80], index: 0, kind: input, shape index: {}]
  %s1 = inlined_call_operand.hbm [shape: f32[2,16,128], index: 1, kind: input, shape index: {}]
  %s2 = inlined_call_operand.hbm [shape: s32[16,128], index: 2, kind: input, shape index: {}]
  %s3 = inlined_call_operand.hbm [shape: s32[16,128], index: 3, kind: input, shape index: {}]
  %s4 = inlined_call_operand.hbm [shape: f32[2,2], index: 4, kind: output, shape index: {}]
  %s5 = sld [smem:[#allocation0]]
  $region34: #{tpu_custom_call.1} parent=0
    _
  %s7 = ssub.s32 1, %s5
  %s8 = scalar_select 0, %s7, %s5
  %10 = dma.hbm_to_smem %s0, 16, [#allocation3], [#allocation2]
  %11 = dma.done [#allocation2], 16
  %12 = sfence
  $region1: #{tpu_custom_call.1} parent=0
    #allocation4 [shape = 'u8[16384]{0}', space=vmem, size = 0x4000, scoped, tag = 'input window, operand 1, single buffered']
    #allocation5 [shape = 's32[1]{0}', space=sflag, size = 0x4, scoped, tag = 'scoped memory for tpu_custom_call.1']
    #allocation6 [shape = 's32[1]{0}', space=sflag, size = 0x4, scoped, tag = 'scoped memory for tpu_custom_call.1']
    #allocation7 [shape = 'u8[8192]{0}', space=vmem, size = 0x2000, scoped, tag = 'input window, operand 2, single buffered']
    #allocation8 [shape = 's32[1]{0}', space=sflag, size = 0x4, scoped, tag = 'scoped memory for tpu_custom_call.1']
    #allocation9 [shape = 'u8[8192]{0}', space=vmem, size = 0x2000, scoped, tag = 'input window, operand 3, single buffered']
    #allocation10 [shape = 'u8[1024]{0}', space=smem, size = 0x400, scoped, tag = 'output window, operand 0, single buffered']
    %13 = vsyncpa [#allocation5], 0
    %14 = vsyncpa [#allocation8], 0
    %15 = vsyncpa [#allocation6], 0
    // Predicated region
    $region2: #{tpu_custom_call.1} parent=1 // pred_check
      _
    $region3: #{tpu_custom_call.1} parent=1 // pred_check_branch
      %17 = sbr.rel (0) target = $region5
    $region4: #{tpu_custom_call.1} parent=1 // pred_region
      %s19 = ssub.s32 512, 512
      %20 = vsyncadd [#allocation5], %s19
      %s21 = sshll.u32 [#allocation4], 4
      %s22 = int_to_ptr.vmem [resolvable:$true] %s21
      %27 = dma.hbm_to_vmem [thread:$0]  %s1, 512, %s22, [#allocation5], 128, 128, 8
    $region5: #{tpu_custom_call.1} parent=1 // pred_fallthru
      _
    // Predicated region
    $region6: #{tpu_custom_call.1} parent=1 // pred_check
      _
    $region7: #{tpu_custom_call.1} parent=1 // pred_check_branch
      %29 = sbr.rel (0) target = $region9
    $region8: #{tpu_custom_call.1} parent=1 // pred_region
      %s31 = ssub.s32 256, 256
      %32 = vsyncadd [#allocation8], %s31
      %s33 = sshll.u32 [#allocation7], 4
      %s34 = int_to_ptr.vmem [resolvable:$true] %s33
      %39 = dma.hbm_to_vmem [thread:$0]  %s2, 256, %s34, [#allocation8], 128, 128, 8
    $region9: #{tpu_custom_call.1} parent=1 // pred_fallthru
      _
    // Predicated region
    $region10: #{tpu_custom_call.1} parent=1 // pred_check
      _
    $region11: #{tpu_custom_call.1} parent=1 // pred_check_branch
      %41 = sbr.rel (0) target = $region13
    $region12: #{tpu_custom_call.1} parent=1 // pred_region
      %s43 = ssub.s32 256, 256
      %44 = vsyncadd [#allocation8], %s43
      %s45 = sshll.u32 [#allocation9], 4
      %s46 = int_to_ptr.vmem [resolvable:$true] %s45
      %51 = dma.hbm_to_vmem [thread:$0]  %s3, 256, %s46, [#allocation8], 128, 128, 8
    $region13: #{tpu_custom_call.1} parent=1 // pred_fallthru
      _
    // Predicated region
    $region14: #{tpu_custom_call.1} parent=1 // pred_check
      _
    $region15: #{tpu_custom_call.1} parent=1 // pred_check_branch
      %53 = sbr.rel (0) target = $region17
    $region16: #{tpu_custom_call.1} parent=1 // pred_region
      %54 = dma.done [#allocation5], 512
    $region17: #{tpu_custom_call.1} parent=1 // pred_fallthru
      _
    // Predicated region
    $region18: #{tpu_custom_call.1} parent=1 // pred_check
      _
    $region19: #{tpu_custom_call.1} parent=1 // pred_check_branch
      %56 = sbr.rel (0) target = $region21
    $region20: #{tpu_custom_call.1} parent=1 // pred_region
      %57 = dma.done [#allocation8], 256
    $region21: #{tpu_custom_call.1} parent=1 // pred_fallthru
      _
    // Predicated region
    $region22: #{tpu_custom_call.1} parent=1 // pred_check
      _
    $region23: #{tpu_custom_call.1} parent=1 // pred_check_branch
      %59 = sbr.rel (0) target = $region25
    $region24: #{tpu_custom_call.1} parent=1 // pred_region
      %60 = dma.done [#allocation8], 256
    $region25: #{tpu_custom_call.1} parent=1 // pred_fallthru
      _
    %v61 = vld [vmem:[#allocation7] sm:$0xff]
    %v62 = vld [vmem:[#allocation9] sm:$0xff]
    %v63 = vld [vmem:[#allocation4] sm:$0xff]
    %s64 = sld [smem:[#allocation3]]
    %s65 = sld [smem:[#allocation3 + $0x1]]
    %s66 = sld [smem:[#allocation3 + $0x2]]
    %s67 = sld [smem:[#allocation3 + $0x3]]
    %v68 = vstv %s65
    %vm69 = vcmp.ge.s32.totalorder %v61, %v68
    %v70 = vstv %s67
    %vm71 = vcmp.lt.s32.totalorder %v61, %v70
    %vm72 = vmand %vm69, %vm71
    %v73 = vstv %s64
    %vm74 = vcmp.ge.s32.totalorder %v62, %v73
    %vm75 = vmand %vm72, %vm74
    %v76 = vstv %s66
    %vm77 = vcmp.lt.s32.totalorder %v62, %v76
    %vm78 = vmand %vm75, %vm77
    %s79 = sld [smem:[#allocation3 + $0x4]]
    %s80 = sld [smem:[#allocation3 + $0x5]]
    %s81 = sld [smem:[#allocation3 + $0x6]]
    %s82 = sld [smem:[#allocation3 + $0x7]]
    %v83 = vstv %s80
    %vm84 = vcmp.ge.s32.totalorder %v61, %v83
    %v85 = vstv %s82
    %vm86 = vcmp.lt.s32.totalorder %v61, %v85
    %vm87 = vmand %vm84, %vm86
    %v88 = vstv %s79
    %vm89 = vcmp.ge.s32.totalorder %v62, %v88
    %vm90 = vmand %vm87, %vm89
    %v91 = vstv %s81
    %vm92 = vcmp.lt.s32.totalorder %v62, %v91
    %vm93 = vmand %vm90, %vm92
    %s94 = sld [smem:[#allocation3 + $0x8]]
    %s95 = sld [smem:[#allocation3 + $0x9]]
    %s96 = sld [smem:[#allocation3 + $0xa]]
    %s97 = sld [smem:[#allocation3 + $0xb]]
    %v98 = vstv %s95
    %vm99 = vcmp.ge.s32.totalorder %v61, %v98
    %v100 = vstv %s97
    %vm101 = vcmp.lt.s32.totalorder %v61, %v100
    %vm102 = vmand %vm99, %vm101
    %v103 = vstv %s94
    %vm104 = vcmp.ge.s32.totalorder %v62, %v103
    %vm105 = vmand %vm102, %vm104
    %v106 = vstv %s96
    %vm107 = vcmp.lt.s32.totalorder %v62, %v106
    %vm108 = vmand %vm105, %vm107
    %s109 = sld [smem:[#allocation3 + $0xc]]
    %s110 = sld [smem:[#allocation3 + $0xd]]
    %s111 = sld [smem:[#allocation3 + $0xe]]
    %s112 = sld [smem:[#allocation3 + $0xf]]
    %v113 = vstv %s110
    %vm114 = vcmp.ge.s32.totalorder %v61, %v113
    %v115 = vstv %s112
    %vm116 = vcmp.lt.s32.totalorder %v61, %v115
    %vm117 = vmand %vm114, %vm116
    %v118 = vstv %s109
    %vm119 = vcmp.ge.s32.totalorder %v62, %v118
    %vm120 = vmand %vm117, %vm119
    %v121 = vstv %s111
    %vm122 = vcmp.lt.s32.totalorder %v62, %v121
    %vm123 = vmand %vm120, %vm122
    %s124 = sld [smem:[#allocation3 + $0x10]]
    %s125 = sld [smem:[#allocation3 + $0x11]]
    %s126 = sld [smem:[#allocation3 + $0x12]]
    %s127 = sld [smem:[#allocation3 + $0x13]]
    %v128 = vstv %s125
    %vm129 = vcmp.ge.s32.totalorder %v61, %v128
    %v130 = vstv %s127
    %vm131 = vcmp.lt.s32.totalorder %v61, %v130
    %vm132 = vmand %vm129, %vm131
    %v133 = vstv %s124
    %vm134 = vcmp.ge.s32.totalorder %v62, %v133
    %vm135 = vmand %vm132, %vm134
    %v136 = vstv %s126
    %vm137 = vcmp.lt.s32.totalorder %v62, %v136
    %vm138 = vmand %vm135, %vm137
    %vm139 = vmor %vm78, %vm93
    %vm140 = vmor %vm139, %vm108
    %vm141 = vmor %vm140, %vm123
    %vm142 = vmor %vm141, %vm138
    %v143 = vsub.f32 %v63, 1.0
    %v144 = vand.u32 2147483647, %v143
    %v145 = vsel %vm142, %v144, 0.0
    %v146 = vadd.f32 %v145, 0.0
    %v147 = vmul.f32 %v63, %v63
    %v148 = vadd.f32 %v147, 0.0
    %v149 = vmul.f32 %v63, 2.0
    %v150 = vsub.f32 1.0, %v149
    %v151 = vsel %vm142, %v150, 0.0
    %v152 = vadd.f32 %v148, %v151
    %s153 = scalar_lea.vmem [#allocation4], 16
    %v154 = vld [vmem:[%s153] sm:$0xff]
    %s155 = sld [smem:[#allocation3 + $0x14]]
    %s156 = sld [smem:[#allocation3 + $0x15]]
    %s157 = sld [smem:[#allocation3 + $0x16]]
    %s158 = sld [smem:[#allocation3 + $0x17]]
    %v159 = vstv %s156
    %vm160 = vcmp.ge.s32.totalorder %v61, %v159
    %v161 = vstv %s158
    %vm162 = vcmp.lt.s32.totalorder %v61, %v161
    %vm163 = vmand %vm160, %vm162
    %v164 = vstv %s155
    %vm165 = vcmp.ge.s32.totalorder %v62, %v164
    %vm166 = vmand %vm163, %vm165
    %v167 = vstv %s157
    %vm168 = vcmp.lt.s32.totalorder %v62, %v167
    %vm169 = vmand %vm166, %vm168
    %s170 = sld [smem:[#allocation3 + $0x18]]
    %s171 = sld [smem:[#allocation3 + $0x19]]
    %s172 = sld [smem:[#allocation3 + $0x1a]]
    %s173 = sld [smem:[#allocation3 + $0x1b]]
    %v174 = vstv %s171
    %vm175 = vcmp.ge.s32.totalorder %v61, %v174
    %v176 = vstv %s173
    %vm177 = vcmp.lt.s32.totalorder %v61, %v176
    %vm178 = vmand %vm175, %vm177
    %v179 = vstv %s170
    %vm180 = vcmp.ge.s32.totalorder %v62, %v179
    %vm181 = vmand %vm178, %vm180
    %v182 = vstv %s172
    %vm183 = vcmp.lt.s32.totalorder %v62, %v182
    %vm184 = vmand %vm181, %vm183
    %s185 = sld [smem:[#allocation3 + $0x1c]]
    %s186 = sld [smem:[#allocation3 + $0x1d]]
    %s187 = sld [smem:[#allocation3 + $0x1e]]
    %s188 = sld [smem:[#allocation3 + $0x1f]]
    %v189 = vstv %s186
    %vm190 = vcmp.ge.s32.totalorder %v61, %v189
    %v191 = vstv %s188
    %vm192 = vcmp.lt.s32.totalorder %v61, %v191
    %vm193 = vmand %vm190, %vm192
    %v194 = vstv %s185
    %vm195 = vcmp.ge.s32.totalorder %v62, %v194
    %vm196 = vmand %vm193, %vm195
    %v197 = vstv %s187
    %vm198 = vcmp.lt.s32.totalorder %v62, %v197
    %vm199 = vmand %vm196, %vm198
    %s200 = sld [smem:[#allocation3 + $0x20]]
    %s201 = sld [smem:[#allocation3 + $0x21]]
    %s202 = sld [smem:[#allocation3 + $0x22]]
    %s203 = sld [smem:[#allocation3 + $0x23]]
    %v204 = vstv %s201
    %vm205 = vcmp.ge.s32.totalorder %v61, %v204
    %v206 = vstv %s203
    %vm207 = vcmp.lt.s32.totalorder %v61, %v206
    %vm208 = vmand %vm205, %vm207
    %v209 = vstv %s200
    %vm210 = vcmp.ge.s32.totalorder %v62, %v209
    %vm211 = vmand %vm208, %vm210
    %v212 = vstv %s202
    %vm213 = vcmp.lt.s32.totalorder %v62, %v212
    %vm214 = vmand %vm211, %vm213
    %s215 = sld [smem:[#allocation3 + $0x24]]
    %s216 = sld [smem:[#allocation3 + $0x25]]
    %s217 = sld [smem:[#allocation3 + $0x26]]
    %s218 = sld [smem:[#allocation3 + $0x27]]
    %v219 = vstv %s216
    %vm220 = vcmp.ge.s32.totalorder %v61, %v219
    %v221 = vstv %s218
    %vm222 = vcmp.lt.s32.totalorder %v61, %v221
    %vm223 = vmand %vm220, %vm222
    %v224 = vstv %s215
    %vm225 = vcmp.ge.s32.totalorder %v62, %v224
    %vm226 = vmand %vm223, %vm225
    %v227 = vstv %s217
    %vm228 = vcmp.lt.s32.totalorder %v62, %v227
    %vm229 = vmand %vm226, %vm228
    %vm230 = vmor %vm169, %vm184
    %vm231 = vmor %vm230, %vm199
    %vm232 = vmor %vm231, %vm214
    %vm233 = vmor %vm232, %vm229
    %v234 = vsub.f32 %v154, 1.0
    %v235 = vand.u32 2147483647, %v234
    %v236 = vsel %vm233, %v235, 0.0
    %v237 = vadd.f32 %v146, %v236
    %v238 = vmul.f32 %v154, %v154
    %v239 = vadd.f32 %v152, %v238
    %v240 = vmul.f32 %v154, 2.0
    %v241 = vsub.f32 1.0, %v240
    %v242 = vsel %vm233, %v241, 0.0
    %v243 = vadd.f32 %v239, %v242
    %244 = vadd.xlane.f32.xlu0 %v237
    %v245 = vpop.xlane.xlu0 %244
    %v246 = vrot.slane %v245, 4
    %v247 = vadd.f32 %v245, %v246
    %v248 = vrot.slane %v247, 2
    %v249 = vadd.f32 %v247, %v248
    %v250 = vrot.slane %v249, 1
    %v251 = vadd.f32 %v249, %v250
    %s252 = vtos %v251
    %s253 = scalar_lea.smem [#allocation10], 0
    %254 = sst [smem:[%s253]] %s252
    %255 = vadd.xlane.f32.xlu0 %v243
    %v256 = vpop.xlane.xlu0 %255
    %v257 = vrot.slane %v256, 4
    %v258 = vadd.f32 %v256, %v257
    %v259 = vrot.slane %v258, 2
    %v260 = vadd.f32 %v258, %v259
    %v261 = vrot.slane %v260, 1
    %v262 = vadd.f32 %v260, %v261
    %s263 = vtos %v262
    %s264 = scalar_lea.smem [#allocation10], 1
    %265 = sst [smem:[%s264]] %s263
    %v266 = vld [vmem:[#allocation7 + $0x8] sm:$0xff]
    %v267 = vld [vmem:[#allocation9 + $0x8] sm:$0xff]
    %v268 = vld [vmem:[#allocation4 + $0x8] sm:$0xff]
    %s269 = sld [smem:[#allocation3 + $0x28]]
    %s270 = sld [smem:[#allocation3 + $0x29]]
    %s271 = sld [smem:[#allocation3 + $0x2a]]
    %s272 = sld [smem:[#allocation3 + $0x2b]]
    %v273 = vstv %s270
    %vm274 = vcmp.ge.s32.totalorder %v266, %v273
    %v275 = vstv %s272
    %vm276 = vcmp.lt.s32.totalorder %v266, %v275
    %vm277 = vmand %vm274, %vm276
    %v278 = vstv %s269
    %vm279 = vcmp.ge.s32.totalorder %v267, %v278
    %vm280 = vmand %vm277, %vm279
    %v281 = vstv %s271
    %vm282 = vcmp.lt.s32.totalorder %v267, %v281
    %vm283 = vmand %vm280, %vm282
    %s284 = sld [smem:[#allocation3 + $0x2c]]
    %s285 = sld [smem:[#allocation3 + $0x2d]]
    %s286 = sld [smem:[#allocation3 + $0x2e]]
    %s287 = sld [smem:[#allocation3 + $0x2f]]
    %v288 = vstv %s285
    %vm289 = vcmp.ge.s32.totalorder %v266, %v288
    %v290 = vstv %s287
    %vm291 = vcmp.lt.s32.totalorder %v266, %v290
    %vm292 = vmand %vm289, %vm291
    %v293 = vstv %s284
    %vm294 = vcmp.ge.s32.totalorder %v267, %v293
    %vm295 = vmand %vm292, %vm294
    %v296 = vstv %s286
    %vm297 = vcmp.lt.s32.totalorder %v267, %v296
    %vm298 = vmand %vm295, %vm297
    %s299 = sld [smem:[#allocation3 + $0x30]]
    %s300 = sld [smem:[#allocation3 + $0x31]]
    %s301 = sld [smem:[#allocation3 + $0x32]]
    %s302 = sld [smem:[#allocation3 + $0x33]]
    %v303 = vstv %s300
    %vm304 = vcmp.ge.s32.totalorder %v266, %v303
    %v305 = vstv %s302
    %vm306 = vcmp.lt.s32.totalorder %v266, %v305
    %vm307 = vmand %vm304, %vm306
    %v308 = vstv %s299
    %vm309 = vcmp.ge.s32.totalorder %v267, %v308
    %vm310 = vmand %vm307, %vm309
    %v311 = vstv %s301
    %vm312 = vcmp.lt.s32.totalorder %v267, %v311
    %vm313 = vmand %vm310, %vm312
    %s314 = sld [smem:[#allocation3 + $0x34]]
    %s315 = sld [smem:[#allocation3 + $0x35]]
    %s316 = sld [smem:[#allocation3 + $0x36]]
    %s317 = sld [smem:[#allocation3 + $0x37]]
    %v318 = vstv %s315
    %vm319 = vcmp.ge.s32.totalorder %v266, %v318
    %v320 = vstv %s317
    %vm321 = vcmp.lt.s32.totalorder %v266, %v320
    %vm322 = vmand %vm319, %vm321
    %v323 = vstv %s314
    %vm324 = vcmp.ge.s32.totalorder %v267, %v323
    %vm325 = vmand %vm322, %vm324
    %v326 = vstv %s316
    %vm327 = vcmp.lt.s32.totalorder %v267, %v326
    %vm328 = vmand %vm325, %vm327
    %s329 = sld [smem:[#allocation3 + $0x38]]
    %s330 = sld [smem:[#allocation3 + $0x39]]
    %s331 = sld [smem:[#allocation3 + $0x3a]]
    %s332 = sld [smem:[#allocation3 + $0x3b]]
    %v333 = vstv %s330
    %vm334 = vcmp.ge.s32.totalorder %v266, %v333
    %v335 = vstv %s332
    %vm336 = vcmp.lt.s32.totalorder %v266, %v335
    %vm337 = vmand %vm334, %vm336
    %v338 = vstv %s329
    %vm339 = vcmp.ge.s32.totalorder %v267, %v338
    %vm340 = vmand %vm337, %vm339
    %v341 = vstv %s331
    %vm342 = vcmp.lt.s32.totalorder %v267, %v341
    %vm343 = vmand %vm340, %vm342
    %vm344 = vmor %vm283, %vm298
    %vm345 = vmor %vm344, %vm313
    %vm346 = vmor %vm345, %vm328
    %vm347 = vmor %vm346, %vm343
    %v348 = vsub.f32 %v268, 1.0
    %v349 = vand.u32 2147483647, %v348
    %v350 = vsel %vm347, %v349, 0.0
    %v351 = vadd.f32 %v350, 0.0
    %v352 = vmul.f32 %v268, %v268
    %v353 = vadd.f32 %v352, 0.0
    %v354 = vmul.f32 %v268, 2.0
    %v355 = vsub.f32 1.0, %v354
    %v356 = vsel %vm347, %v355, 0.0
    %v357 = vadd.f32 %v353, %v356
    %v358 = vld [vmem:[%s153 + $0x8] sm:$0xff]
    %s359 = sld [smem:[#allocation3 + $0x3c]]
    %s360 = sld [smem:[#allocation3 + $0x3d]]
    %s361 = sld [smem:[#allocation3 + $0x3e]]
    %s362 = sld [smem:[#allocation3 + $0x3f]]
    %v363 = vstv %s360
    %vm364 = vcmp.ge.s32.totalorder %v266, %v363
    %v365 = vstv %s362
    %vm366 = vcmp.lt.s32.totalorder %v266, %v365
    %vm367 = vmand %vm364, %vm366
    %v368 = vstv %s359
    %vm369 = vcmp.ge.s32.totalorder %v267, %v368
    %vm370 = vmand %vm367, %vm369
    %v371 = vstv %s361
    %vm372 = vcmp.lt.s32.totalorder %v267, %v371
    %vm373 = vmand %vm370, %vm372
    %s374 = sld [smem:[#allocation3 + $0x40]]
    %s375 = sld [smem:[#allocation3 + $0x41]]
    %s376 = sld [smem:[#allocation3 + $0x42]]
    %s377 = sld [smem:[#allocation3 + $0x43]]
    %v378 = vstv %s375
    %vm379 = vcmp.ge.s32.totalorder %v266, %v378
    %v380 = vstv %s377
    %vm381 = vcmp.lt.s32.totalorder %v266, %v380
    %vm382 = vmand %vm379, %vm381
    %v383 = vstv %s374
    %vm384 = vcmp.ge.s32.totalorder %v267, %v383
    %vm385 = vmand %vm382, %vm384
    %v386 = vstv %s376
    %vm387 = vcmp.lt.s32.totalorder %v267, %v386
    %vm388 = vmand %vm385, %vm387
    %s389 = sld [smem:[#allocation3 + $0x44]]
    %s390 = sld [smem:[#allocation3 + $0x45]]
    %s391 = sld [smem:[#allocation3 + $0x46]]
    %s392 = sld [smem:[#allocation3 + $0x47]]
    %v393 = vstv %s390
    %vm394 = vcmp.ge.s32.totalorder %v266, %v393
    %v395 = vstv %s392
    %vm396 = vcmp.lt.s32.totalorder %v266, %v395
    %vm397 = vmand %vm394, %vm396
    %v398 = vstv %s389
    %vm399 = vcmp.ge.s32.totalorder %v267, %v398
    %vm400 = vmand %vm397, %vm399
    %v401 = vstv %s391
    %vm402 = vcmp.lt.s32.totalorder %v267, %v401
    %vm403 = vmand %vm400, %vm402
    %s404 = sld [smem:[#allocation3 + $0x48]]
    %s405 = sld [smem:[#allocation3 + $0x49]]
    %s406 = sld [smem:[#allocation3 + $0x4a]]
    %s407 = sld [smem:[#allocation3 + $0x4b]]
    %v408 = vstv %s405
    %vm409 = vcmp.ge.s32.totalorder %v266, %v408
    %v410 = vstv %s407
    %vm411 = vcmp.lt.s32.totalorder %v266, %v410
    %vm412 = vmand %vm409, %vm411
    %v413 = vstv %s404
    %vm414 = vcmp.ge.s32.totalorder %v267, %v413
    %vm415 = vmand %vm412, %vm414
    %v416 = vstv %s406
    %vm417 = vcmp.lt.s32.totalorder %v267, %v416
    %vm418 = vmand %vm415, %vm417
    %s419 = sld [smem:[#allocation3 + $0x4c]]
    %s420 = sld [smem:[#allocation3 + $0x4d]]
    %s421 = sld [smem:[#allocation3 + $0x4e]]
    %s422 = sld [smem:[#allocation3 + $0x4f]]
    %v423 = vstv %s420
    %vm424 = vcmp.ge.s32.totalorder %v266, %v423
    %v425 = vstv %s422
    %vm426 = vcmp.lt.s32.totalorder %v266, %v425
    %vm427 = vmand %vm424, %vm426
    %v428 = vstv %s419
    %vm429 = vcmp.ge.s32.totalorder %v267, %v428
    %vm430 = vmand %vm427, %vm429
    %v431 = vstv %s421
    %vm432 = vcmp.lt.s32.totalorder %v267, %v431
    %vm433 = vmand %vm430, %vm432
    %vm434 = vmor %vm373, %vm388
    %vm435 = vmor %vm434, %vm403
    %vm436 = vmor %vm435, %vm418
    %vm437 = vmor %vm436, %vm433
    %v438 = vsub.f32 %v358, 1.0
    %v439 = vand.u32 2147483647, %v438
    %v440 = vsel %vm437, %v439, 0.0
    %v441 = vadd.f32 %v351, %v440
    %v442 = vmul.f32 %v358, %v358
    %v443 = vadd.f32 %v357, %v442
    %v444 = vmul.f32 %v358, 2.0
    %v445 = vsub.f32 1.0, %v444
    %v446 = vsel %vm437, %v445, 0.0
    %v447 = vadd.f32 %v443, %v446
    %448 = vadd.xlane.f32.xlu0 %v441
    %v449 = vpop.xlane.xlu0 %448
    %v450 = vrot.slane %v449, 4
    %v451 = vadd.f32 %v449, %v450
    %v452 = vrot.slane %v451, 2
    %v453 = vadd.f32 %v451, %v452
    %v454 = vrot.slane %v453, 1
    %v455 = vadd.f32 %v453, %v454
    %s456 = vtos %v455
    %s457 = scalar_lea.smem [#allocation10], 128
    %458 = sst [smem:[%s457]] %s456
    %459 = vadd.xlane.f32.xlu0 %v447
    %v460 = vpop.xlane.xlu0 %459
    %v461 = vrot.slane %v460, 4
    %v462 = vadd.f32 %v460, %v461
    %v463 = vrot.slane %v462, 2
    %v464 = vadd.f32 %v462, %v463
    %v465 = vrot.slane %v464, 1
    %v466 = vadd.f32 %v464, %v465
    %s467 = vtos %v466
    %s468 = scalar_lea.smem [#allocation10], 129
    %469 = sst [smem:[%s468]] %s467
    // Predicated region
    $region26: #{tpu_custom_call.1} parent=1 // pred_check
      _
    $region27: #{tpu_custom_call.1} parent=1 // pred_check_branch
      %471 = sbr.rel (0) target = $region29
    $region28: #{tpu_custom_call.1} parent=1 // pred_region
      %s473 = ssub.s32 32, 32
      %474 = vsyncadd [#allocation6], %s473
      %477 = dma.smem_to_hbm [#allocation10], 32, %s4, [#allocation6]
    $region29: #{tpu_custom_call.1} parent=1 // pred_fallthru
      _
    // Predicated region
    $region30: #{tpu_custom_call.1} parent=1 // pred_check
      _
    $region31: #{tpu_custom_call.1} parent=1 // pred_check_branch
      %479 = sbr.rel (0) target = $region33
    $region32: #{tpu_custom_call.1} parent=1 // pred_region
      %480 = dma.done [#allocation6], 32
    $region33: #{tpu_custom_call.1} parent=1 // pred_fallthru
      _
    %481 = sfence
    %482 = vsyncpa [#allocation5], 1
    %483 = vsyncpa [#allocation8], 1
    %484 = vsyncpa [#allocation6], 1

</llo_original>
